<compile_context>
chip_gen: v7x
topology: tpu7x:2x2x1
jax: 0.10.0
libtpu: 0.0.40
codegen_flags: <defaults>
</compile_context>

<pallas_src>
import functools

import jax
import jax.numpy as jnp
from jax.experimental import pallas as pl
from jax.experimental.pallas import tpu as pltpu

HIDDEN = 128
BF16_SUBLANE = 16      # bf16 native tile is (16, 128)
MIN_SPLIT_BATCH = 256  # only force a 2-way tile split above this batch size


def _round_up(x, m):
    return ((x + m - 1) // m) * m


def dqn_mlp_kernel(x_ref, w1_ref, b1_ref, w2_ref, b2_ref, w3_ref, b3_ref, o_ref):
    # Cast the f32 input tile to bf16 inside the kernel (no HBM round-trip).
    x = x_ref[...].astype(jnp.bfloat16)

    # Layer 1: Linear(input_dim, 128) + ReLU.  bf16 operands, f32 accumulate.
    h1 = jnp.dot(x, w1_ref[...], preferred_element_type=jnp.float32)
    h1 = jnp.maximum(h1 + b1_ref[...], 0.0).astype(jnp.bfloat16)

    # Layer 2: Linear(128, 128) + ReLU.
    h2 = jnp.dot(h1, w2_ref[...], preferred_element_type=jnp.float32)
    h2 = jnp.maximum(h2 + b2_ref[...], 0.0).astype(jnp.bfloat16)

    # Layer 3: Linear(128, output_dim) -> Q-values (real width, f32 store).
    q = jnp.dot(h2, w3_ref[...], preferred_element_type=jnp.float32)
    o_ref[...] = (q + b3_ref[...]).astype(o_ref.dtype)

    # TODO(synk): for the single-observation action-selection path, fuse the
    # argmax over Q-values into this epilogue so only int32 indices leave VMEM.


@functools.partial(jax.jit, static_argnames=("block_batch",))
def dqn_forward(x, params, *, block_batch=512):
    """x: (batch, input_dim) float32.  params: output of prepare_params().

    Returns (batch, output_dim) float32 Q-values.
    """
    batch, input_dim = x.shape
    output_dim = params["W3"].shape[1]

    # ----- tile selection ------------------------------------------------
    tb = _round_up(min(block_batch, batch), BF16_SUBLANE)
    # v7x has 2 TensorCores: ensure >=2 grid steps for large batches so the
    # "parallel" axis actually shards (skip for small latency-bound batches).
    if pl.cdiv(batch, tb) < 2 and batch >= MIN_SPLIT_BATCH:
        tb = _round_up(pl.cdiv(batch, 2), BF16_SUBLANE)
    grid = (pl.cdiv(batch, tb),)   # partial last block handled by masking

    # ----- block specs ---------------------------------------------------
    in_specs = [
        pl.BlockSpec((tb, input_dim), lambda i: (i, 0)),          # x tile (f32)
        pl.BlockSpec((input_dim, HIDDEN), lambda i: (0, 0)),      # W1 (resident)
        pl.BlockSpec((1, HIDDEN), lambda i: (0, 0)),              # b1
        pl.BlockSpec((HIDDEN, HIDDEN), lambda i: (0, 0)),         # W2
        pl.BlockSpec((1, HIDDEN), lambda i: (0, 0)),              # b2
        pl.BlockSpec((HIDDEN, output_dim), lambda i: (0, 0)),     # W3 (real width)
        pl.BlockSpec((1, output_dim), lambda i: (0, 0)),          # b3
    ]
    out_specs = pl.BlockSpec((tb, output_dim), lambda i: (i, 0))

    return pl.pallas_call(
        dqn_mlp_kernel,
        out_shape=jax.ShapeDtypeStruct((batch, output_dim), jnp.float32),
        grid=grid,
        in_specs=in_specs,
        out_specs=out_specs,
        compiler_params=pltpu.CompilerParams(
            dimension_semantics=("parallel",),   # megacore sharding on v7x
        ),
    )(x, params["W1"], params["b1"], params["W2"], params["b2"],
      params["W3"], params["b3"])


def init_params(key, input_dim, output_dim):
    """Deterministic f32 init mimicking PyTorch nn.Linear default (U[-1/sqrt(fan_in), +])."""
    ks = jax.random.split(key, 6)

    def linear(kw, kb, fan_in, fan_out):
        bound = 1.0 / jnp.sqrt(fan_in)
        W = jax.random.uniform(kw, (fan_in, fan_out), jnp.float32, -bound, bound)
        b = jax.random.uniform(kb, (1, fan_out), jnp.float32, -bound, bound)
        return W, b

    W1, b1 = linear(ks[0], ks[1], input_dim, HIDDEN)
    W2, b2 = linear(ks[2], ks[3], HIDDEN, HIDDEN)
    W3, b3 = linear(ks[4], ks[5], HIDDEN, output_dim)
    return {"W1": W1, "b1": b1, "W2": W2, "b2": b2, "W3": W3, "b3": b3}


def prepare_params(params):
    """One-time operand prep (call after init / each optimizer update):
    bf16 weights for MXU, f32 biases for the epilogue.  Keeps the per-call
    forward free of cast/pad kernels."""
    return {
        "W1": params["W1"].astype(jnp.bfloat16),
        "W2": params["W2"].astype(jnp.bfloat16),
        "W3": params["W3"].astype(jnp.bfloat16),
        "b1": params["b1"].astype(jnp.float32),
        "b2": params["b2"].astype(jnp.float32),
        "b3": params["b3"].astype(jnp.float32),
    }


def _reference(x, params):
    """Plain-JAX reference with the same bf16-operand / f32-accumulate math."""
    f32 = jnp.float32
    xb = x.astype(jnp.bfloat16)
    w1 = params["W1"].astype(jnp.bfloat16)
    w2 = params["W2"].astype(jnp.bfloat16)
    w3 = params["W3"].astype(jnp.bfloat16)
    h1 = jnp.maximum(jnp.dot(xb, w1, preferred_element_type=f32) + params["b1"], 0.0)
    h1 = h1.astype(jnp.bfloat16)
    h2 = jnp.maximum(jnp.dot(h1, w2, preferred_element_type=f32) + params["b2"], 0.0)
    h2 = h2.astype(jnp.bfloat16)
    return jnp.dot(h2, w3, preferred_element_type=f32) + params["b3"]


if __name__ == "__main__":
    key = jax.random.PRNGKey(0)
    k_x, k_p = jax.random.split(key)

    # Small DQN-ish shapes: a replay minibatch of 50 observations of dim 32,
    # 8 discrete actions.  block_batch=32 -> tb=32, grid=(2,), and the second
    # tile is partial (18 valid rows) so the no-pad masking path is exercised.
    batch, input_dim, output_dim = 50, 32, 8
    x = jax.random.normal(k_x, (batch, input_dim), jnp.float32)
    raw_params = init_params(k_p, input_dim, output_dim)
    params = prepare_params(raw_params)   # one-time bf16 cast, not per call

    out = dqn_forward(x, params, block_batch=32)
    jax.block_until_ready(out)
    assert out.shape == (batch, output_dim)

    ref = _reference(x, raw_params)
    assert jnp.allclose(out, ref, atol=2e-2, rtol=2e-2), (
        float(jnp.max(jnp.abs(out - ref))))

    print("KERNEL_OK")
</pallas_src>

<mosaic_0001>
module attributes {stable_mosaic.version = 11 : i64} {
  func.func @dqn_mlp_kernel(%arg0: i32, %arg1: memref<32x32xf32, #tpu.memory_space<vmem>>, %arg2: memref<32x128xbf16, #tpu.memory_space<vmem>>, %arg3: memref<1x128xf32, #tpu.memory_space<vmem>>, %arg4: memref<128x128xbf16, #tpu.memory_space<vmem>>, %arg5: memref<1x128xf32, #tpu.memory_space<vmem>>, %arg6: memref<128x8xbf16, #tpu.memory_space<vmem>>, %arg7: memref<1x8xf32, #tpu.memory_space<vmem>>, %arg8: memref<32x8xf32, #tpu.memory_space<vmem>>) attributes {dimension_semantics = [#tpu.dimension_semantics<parallel>], iteration_bounds = array<i64: 2>, scalar_prefetch = 0 : i64, scratch_operands = 0 : i64, tpu.core_type = #tpu.core_type<tc>, window_params = [{transform_indices = @transform_0, window_bounds = array<i64: 32, 32>}, {pipeline_mode = #tpu.pipeline_mode<synchronous>, transform_indices = @transform_1, window_bounds = array<i64: 32, 128>}, {pipeline_mode = #tpu.pipeline_mode<synchronous>, transform_indices = @transform_2, window_bounds = array<i64: 1, 128>}, {pipeline_mode = #tpu.pipeline_mode<synchronous>, transform_indices = @transform_3, window_bounds = array<i64: 128, 128>}, {pipeline_mode = #tpu.pipeline_mode<synchronous>, transform_indices = @transform_4, window_bounds = array<i64: 1, 128>}, {pipeline_mode = #tpu.pipeline_mode<synchronous>, transform_indices = @transform_5, window_bounds = array<i64: 128, 8>}, {pipeline_mode = #tpu.pipeline_mode<synchronous>, transform_indices = @transform_6, window_bounds = array<i64: 1, 8>}, {transform_indices = @transform_7, window_bounds = array<i64: 32, 8>}]} {
    %c0 = arith.constant 0 : index
    %c0_0 = arith.constant 0 : index
    %0 = vector.load %arg1[%c0, %c0_0] : memref<32x32xf32, #tpu.memory_space<vmem>>, vector<32x32xf32>
    %1 = arith.truncf %0 : vector<32x32xf32> to vector<32x32xbf16>
    %c0_1 = arith.constant 0 : index
    %c0_2 = arith.constant 0 : index
    %2 = vector.load %arg2[%c0_1, %c0_2] : memref<32x128xbf16, #tpu.memory_space<vmem>>, vector<32x128xbf16>
    %cst = arith.constant dense<0.000000e+00> : vector<32x128xf32>
    %3 = tpu.matmul %1, %2, %cst {dimension_numbers = #tpu.dot_dimension_numbers<[1], [0], [0], [1], [0, 0, 1, 1], [], []>} : vector<32x32xbf16>, vector<32x128xbf16>, vector<32x128xf32> -> vector<32x128xf32>
    %c0_3 = arith.constant 0 : index
    %c0_4 = arith.constant 0 : index
    %4 = vector.load %arg3[%c0_3, %c0_4] : memref<1x128xf32, #tpu.memory_space<vmem>>, vector<1x128xf32>
    %5 = vector.broadcast %4 : vector<1x128xf32> to vector<32x128xf32>
    %6 = arith.addf %3, %5 : vector<32x128xf32>
    %cst_5 = arith.constant 0.000000e+00 : f32
    %7 = vector.broadcast %cst_5 : f32 to vector<32x128xf32>
    %8 = arith.maximumf %6, %7 : vector<32x128xf32>
    %9 = arith.truncf %8 : vector<32x128xf32> to vector<32x128xbf16>
    %c0_6 = arith.constant 0 : index
    %c0_7 = arith.constant 0 : index
    %10 = vector.load %arg4[%c0_6, %c0_7] : memref<128x128xbf16, #tpu.memory_space<vmem>>, vector<128x128xbf16>
    %cst_8 = arith.constant dense<0.000000e+00> : vector<32x128xf32>
    %11 = tpu.matmul %9, %10, %cst_8 {dimension_numbers = #tpu.dot_dimension_numbers<[1], [0], [0], [1], [0, 0, 1, 1], [], []>} : vector<32x128xbf16>, vector<128x128xbf16>, vector<32x128xf32> -> vector<32x128xf32>
    %c0_9 = arith.constant 0 : index
    %c0_10 = arith.constant 0 : index
    %12 = vector.load %arg5[%c0_9, %c0_10] : memref<1x128xf32, #tpu.memory_space<vmem>>, vector<1x128xf32>
    %13 = vector.broadcast %12 : vector<1x128xf32> to vector<32x128xf32>
    %14 = arith.addf %11, %13 : vector<32x128xf32>
    %cst_11 = arith.constant 0.000000e+00 : f32
    %15 = vector.broadcast %cst_11 : f32 to vector<32x128xf32>
    %16 = arith.maximumf %14, %15 : vector<32x128xf32>
    %17 = arith.truncf %16 : vector<32x128xf32> to vector<32x128xbf16>
    %c0_12 = arith.constant 0 : index
    %c0_13 = arith.constant 0 : index
    %18 = vector.load %arg6[%c0_12, %c0_13] : memref<128x8xbf16, #tpu.memory_space<vmem>>, vector<128x8xbf16>
    %cst_14 = arith.constant dense<0.000000e+00> : vector<32x8xf32>
    %19 = tpu.matmul %17, %18, %cst_14 {dimension_numbers = #tpu.dot_dimension_numbers<[1], [0], [0], [1], [0, 0, 1, 1], [], []>} : vector<32x128xbf16>, vector<128x8xbf16>, vector<32x8xf32> -> vector<32x8xf32>
    %c0_15 = arith.constant 0 : index
    %c0_16 = arith.constant 0 : index
    %20 = vector.load %arg7[%c0_15, %c0_16] : memref<1x8xf32, #tpu.memory_space<vmem>>, vector<1x8xf32>
    %21 = vector.broadcast %20 : vector<1x8xf32> to vector<32x8xf32>
    %22 = arith.addf %19, %21 : vector<32x8xf32>
    %c0_17 = arith.constant 0 : index
    %c0_18 = arith.constant 0 : index
    %23 = vector.load %arg8[%c0_17, %c0_18] : memref<32x8xf32, #tpu.memory_space<vmem>>, vector<32x8xf32>
    tpu.vector_store %arg8[%c0_17, %c0_18], %22 {strides = array<i32>} : memref<32x8xf32, #tpu.memory_space<vmem>>, vector<32x8xf32>,
    return
  }
  func.func @transform_0(%arg0: i32) -> (i32, i32) {
    %c0_i32 = arith.constant 0 : i32
    %c0_i32_0 = arith.constant 0 : i32
    return %arg0, %c0_i32 : i32, i32
  }
  func.func @transform_1(%arg0: i32) -> (i32, i32) {
    %c0_i32 = arith.constant 0 : i32
    %c0_i32_0 = arith.constant 0 : i32
    %c0_i32_1 = arith.constant 0 : i32
    return %c0_i32, %c0_i32_0 : i32, i32
  }
  func.func @transform_2(%arg0: i32) -> (i32, i32) {
    %c0_i32 = arith.constant 0 : i32
    %c0_i32_0 = arith.constant 0 : i32
    %c0_i32_1 = arith.constant 0 : i32
    return %c0_i32, %c0_i32_0 : i32, i32
  }
  func.func @transform_3(%arg0: i32) -> (i32, i32) {
    %c0_i32 = arith.constant 0 : i32
    %c0_i32_0 = arith.constant 0 : i32
    %c0_i32_1 = arith.constant 0 : i32
    return %c0_i32, %c0_i32_0 : i32, i32
  }
  func.func @transform_4(%arg0: i32) -> (i32, i32) {
    %c0_i32 = arith.constant 0 : i32
    %c0_i32_0 = arith.constant 0 : i32
    %c0_i32_1 = arith.constant 0 : i32
    return %c0_i32, %c0_i32_0 : i32, i32
  }
  func.func @transform_5(%arg0: i32) -> (i32, i32) {
    %c0_i32 = arith.constant 0 : i32
    %c0_i32_0 = arith.constant 0 : i32
    %c0_i32_1 = arith.constant 0 : i32
    return %c0_i32, %c0_i32_0 : i32, i32
  }
  func.func @transform_6(%arg0: i32) -> (i32, i32) {
    %c0_i32 = arith.constant 0 : i32
    %c0_i32_0 = arith.constant 0 : i32
    %c0_i32_1 = arith.constant 0 : i32
    return %c0_i32, %c0_i32_0 : i32, i32
  }
  func.func @transform_7(%arg0: i32) -> (i32, i32) {
    %c0_i32 = arith.constant 0 : i32
    %c0_i32_0 = arith.constant 0 : i32
    return %arg0, %c0_i32 : i32, i32
  }
}

</mosaic_0001>

<llo_original>
// kernel: dqn_forward.1
$region0: #{dqn_forward.1}
  #allocation0 [shape = 'u32[]', space=smem, size = 0x4, offset = 0x4, fixed_abs, tag = 'smem constant byte address 0x4 - core index']
  #allocation1 [shape = 'u32[144,128]{1,0:T(1,128)}', space=vmem, size = 0x12000, scoped, tag = 'internal scratch']
  %s0 = inlined_call_operand.vmem [shape: f32[50,32], index: 0, kind: input, shape index: {}]
  %s1 = inlined_call_operand.vmem [shape: bf16[32,128], index: 1, kind: input, shape index: {}]
  %s2 = inlined_call_operand.vmem [shape: f32[1,128], index: 2, kind: input, shape index: {}]
  %s3 = inlined_call_operand.vmem [shape: bf16[128,128], index: 3, kind: input, shape index: {}]
  %s4 = inlined_call_operand.vmem [shape: f32[1,128], index: 4, kind: input, shape index: {}]
  %s5 = inlined_call_operand.vmem [shape: bf16[128,8], index: 5, kind: input, shape index: {}]
  %s6 = inlined_call_operand.vmem [shape: f32[1,8], index: 6, kind: input, shape index: {}]
  %s7 = inlined_call_operand.vmem [shape: f32[50,8], index: 7, kind: output, shape index: {}]
  %s8 = sld [smem:[#allocation0]]
  $region109: #{dqn_forward.1} parent=0
    _
  %s10 = ssub.s32 1, %s8
  %s11 = scalar_select 0, %s10, %s8
  $region1: #{dqn_forward.1} parent=0
    #allocation2 [shape = 'u8[32768]{0}', space=vmem, size = 0x8000, scoped, tag = 'output window, operand 0']
    loop: start=0, step=1, limit=4
    $region2: #{dqn_forward.1} parent=1 // loop_pre_header
      _
    $region3: #{dqn_forward.1} parent=1 // loop_header
      %s13 = sphi 0, %s17
      %p14 = scmp.ge.s32.totalorder %s13, 4
      %s23 = sphi 0, %s25
      %s26 = sphi 0, %s23
      %s27 = sphi 0, %s26
      %s43 = sphi 0, %s27
      %s47 = sphi 0, %s47
      %s49 = sphi 0, %s47
      %s50 = sphi 0, %s49
      %s64 = sphi 0, %s50
      %s68 = sphi 0, %s68
      %s70 = sphi 0, %s68
      %s71 = sphi 0, %s70
      %s85 = sphi 0, %s71
      %s89 = sphi 0, %s89
      %s91 = sphi 0, %s89
      %s92 = sphi 0, %s91
      %s106 = sphi 0, %s92
      %s110 = sphi 0, %s110
      %s112 = sphi 0, %s110
      %s113 = sphi 0, %s112
      %s127 = sphi 0, %s113
      %s131 = sphi 0, %s131
      %s133 = sphi 0, %s131
      %s134 = sphi 0, %s133
      %s148 = sphi 0, %s134
      %s152 = sphi 0, %s152
      %s154 = sphi 0, %s152
      %s155 = sphi 0, %s154
      %s169 = sphi 0, %s155
      %s175 = sphi 0, %s177
      %s178 = sphi 0, %s175
      %s179 = sphi 0, %s178
      %s195 = sphi 0, %s179
    $region4: #{dqn_forward.1} parent=1 // loop_header_branch
      %16 = sbr.rel (%p14) target = $region8
    $region5: #{dqn_forward.1} parent=1 // loop_body
      %s18 = ssub.s32 %s13, 1
      %s19 = ssub.s32 %s13, 2
      %s20 = sadd.s32 %s13, 1
      %s21 = ssub.s32 %s13, %s20
      %p22 = scmp.eq.s32.totalorder %s21, 0
      %s24 = sadd.s32 %s23, 1
      %s25 = scalar_select %p22, %s23, %s24
      %p28 = pneg %p22
      %p29 = scmp.eq.s32.totalorder %s13, 1
      %p30 = por %p28, %p29
      %p31 = scmp.ne.s32.totalorder %s23, %s26
      %p32 = scmp.eq.s32.totalorder %s13, 0
      %p33 = por %p31, %p32
      %p34 = scmp.ne.s32.totalorder %s23, %s26
      %p35 = scmp.eq.s32.totalorder %s18, 1
      %p36 = por %p34, %p35
      %p37 = scmp.ne.s32.totalorder %s26, %s27
      %p38 = scmp.eq.s32.totalorder %s18, 0
      %p39 = por %p37, %p38
      %p40 = scmp.ne.s32.totalorder %s26, %s27
      %p41 = scmp.eq.s32.totalorder %s19, 1
      %p42 = por %p40, %p41
      %p44 = scmp.ne.s32.totalorder %s27, %s43
      %p45 = scmp.eq.s32.totalorder %s19, 0
      %p46 = por %p44, %p45
      %s48 = sadd.s32 %s47, 1
      %p51 = scmp.eq.s32.totalorder %s13, 1
      %p52 = scmp.ne.s32.totalorder %s47, %s49
      %p53 = scmp.eq.s32.totalorder %s13, 0
      %p54 = por %p52, %p53
      %p55 = scmp.ne.s32.totalorder %s47, %s49
      %p56 = scmp.eq.s32.totalorder %s18, 1
      %p57 = por %p55, %p56
      %p58 = scmp.ne.s32.totalorder %s49, %s50
      %p59 = scmp.eq.s32.totalorder %s18, 0
      %p60 = por %p58, %p59
      %p61 = scmp.ne.s32.totalorder %s49, %s50
      %p62 = scmp.eq.s32.totalorder %s19, 1
      %p63 = por %p61, %p62
      %p65 = scmp.ne.s32.totalorder %s50, %s64
      %p66 = scmp.eq.s32.totalorder %s19, 0
      %p67 = por %p65, %p66
      %s69 = sadd.s32 %s68, 1
      %p72 = scmp.eq.s32.totalorder %s13, 1
      %p73 = scmp.ne.s32.totalorder %s68, %s70
      %p74 = scmp.eq.s32.totalorder %s13, 0
      %p75 = por %p73, %p74
      %p76 = scmp.ne.s32.totalorder %s68, %s70
      %p77 = scmp.eq.s32.totalorder %s18, 1
      %p78 = por %p76, %p77
      %p79 = scmp.ne.s32.totalorder %s70, %s71
      %p80 = scmp.eq.s32.totalorder %s18, 0
      %p81 = por %p79, %p80
      %p82 = scmp.ne.s32.totalorder %s70, %s71
      %p83 = scmp.eq.s32.totalorder %s19, 1
      %p84 = por %p82, %p83
      %p86 = scmp.ne.s32.totalorder %s71, %s85
      %p87 = scmp.eq.s32.totalorder %s19, 0
      %p88 = por %p86, %p87
      %s90 = sadd.s32 %s89, 1
      %p93 = scmp.eq.s32.totalorder %s13, 1
      %p94 = scmp.ne.s32.totalorder %s89, %s91
      %p95 = scmp.eq.s32.totalorder %s13, 0
      %p96 = por %p94, %p95
      %p97 = scmp.ne.s32.totalorder %s89, %s91
      %p98 = scmp.eq.s32.totalorder %s18, 1
      %p99 = por %p97, %p98
      %p100 = scmp.ne.s32.totalorder %s91, %s92
      %p101 = scmp.eq.s32.totalorder %s18, 0
      %p102 = por %p100, %p101
      %p103 = scmp.ne.s32.totalorder %s91, %s92
      %p104 = scmp.eq.s32.totalorder %s19, 1
      %p105 = por %p103, %p104
      %p107 = scmp.ne.s32.totalorder %s92, %s106
      %p108 = scmp.eq.s32.totalorder %s19, 0
      %p109 = por %p107, %p108
      %s111 = sadd.s32 %s110, 1
      %p114 = scmp.eq.s32.totalorder %s13, 1
      %p115 = scmp.ne.s32.totalorder %s110, %s112
      %p116 = scmp.eq.s32.totalorder %s13, 0
      %p117 = por %p115, %p116
      %p118 = scmp.ne.s32.totalorder %s110, %s112
      %p119 = scmp.eq.s32.totalorder %s18, 1
      %p120 = por %p118, %p119
      %p121 = scmp.ne.s32.totalorder %s112, %s113
      %p122 = scmp.eq.s32.totalorder %s18, 0
      %p123 = por %p121, %p122
      %p124 = scmp.ne.s32.totalorder %s112, %s113
      %p125 = scmp.eq.s32.totalorder %s19, 1
      %p126 = por %p124, %p125
      %p128 = scmp.ne.s32.totalorder %s113, %s127
      %p129 = scmp.eq.s32.totalorder %s19, 0
      %p130 = por %p128, %p129
      %s132 = sadd.s32 %s131, 1
      %p135 = scmp.eq.s32.totalorder %s13, 1
      %p136 = scmp.ne.s32.totalorder %s131, %s133
      %p137 = scmp.eq.s32.totalorder %s13, 0
      %p138 = por %p136, %p137
      %p139 = scmp.ne.s32.totalorder %s131, %s133
      %p140 = scmp.eq.s32.totalorder %s18, 1
      %p141 = por %p139, %p140
      %p142 = scmp.ne.s32.totalorder %s133, %s134
      %p143 = scmp.eq.s32.totalorder %s18, 0
      %p144 = por %p142, %p143
      %p145 = scmp.ne.s32.totalorder %s133, %s134
      %p146 = scmp.eq.s32.totalorder %s19, 1
      %p147 = por %p145, %p146
      %p149 = scmp.ne.s32.totalorder %s134, %s148
      %p150 = scmp.eq.s32.totalorder %s19, 0
      %p151 = por %p149, %p150
      %s153 = sadd.s32 %s152, 1
      %p156 = scmp.eq.s32.totalorder %s13, 1
      %p157 = scmp.ne.s32.totalorder %s152, %s154
      %p158 = scmp.eq.s32.totalorder %s13, 0
      %p159 = por %p157, %p158
      %p160 = scmp.ne.s32.totalorder %s152, %s154
      %p161 = scmp.eq.s32.totalorder %s18, 1
      %p162 = por %p160, %p161
      %p163 = scmp.ne.s32.totalorder %s154, %s155
      %p164 = scmp.eq.s32.totalorder %s18, 0
      %p165 = por %p163, %p164
      %p166 = scmp.ne.s32.totalorder %s154, %s155
      %p167 = scmp.eq.s32.totalorder %s19, 1
      %p168 = por %p166, %p167
      %p170 = scmp.ne.s32.totalorder %s155, %s169
      %p171 = scmp.eq.s32.totalorder %s19, 0
      %p172 = por %p170, %p171
      %s173 = ssub.s32 %s13, %s20
      %p174 = scmp.eq.s32.totalorder %s173, 0
      %s176 = sadd.s32 %s175, 1
      %s177 = scalar_select %p174, %s175, %s176
      %p180 = pneg %p174
      %p181 = scmp.eq.s32.totalorder %s13, 1
      %p182 = por %p180, %p181
      %p183 = scmp.ne.s32.totalorder %s175, %s178
      %p184 = scmp.eq.s32.totalorder %s13, 0
      %p185 = por %p183, %p184
      %p186 = scmp.ne.s32.totalorder %s175, %s178
      %p187 = scmp.eq.s32.totalorder %s18, 1
      %p188 = por %p186, %p187
      %p189 = scmp.ne.s32.totalorder %s178, %s179
      %p190 = scmp.eq.s32.totalorder %s18, 0
      %p191 = por %p189, %p190
      %p192 = scmp.ne.s32.totalorder %s178, %s179
      %p193 = scmp.eq.s32.totalorder %s19, 1
      %p194 = por %p192, %p193
      %p196 = scmp.ne.s32.totalorder %s179, %s195
      %p197 = scmp.eq.s32.totalorder %s19, 0
      %p198 = por %p196, %p197
      %p199 = scmp.le.s32.totalorder 1, %s13
      %p200 = scmp.lt.s32.totalorder %s13, 3
      %p201 = pnand %p199, %p200
      %p202 = pneg %p201
      // Predicated region
      $region9: #{dqn_forward.1} parent=5 // pred_check
        _
      $region10: #{dqn_forward.1} parent=5 // pred_check_branch
        %204 = sbr.rel (%p201) target = $region12
      $region11: #{dqn_forward.1} parent=5 // pred_region
        %s205 = ssub.s32 %s13, 1
        // Predicated region
        $region13: #{dqn_forward.1} parent=11 // pred_check
          %p206 = pneg %p60
        $region14: #{dqn_forward.1} parent=11 // pred_check_branch
          %208 = sbr.rel (%p206) target = $region16
        $region15: #{dqn_forward.1} parent=11 // pred_region
          _
        $region16: #{dqn_forward.1} parent=11 // pred_fallthru
          _
        // Predicated region
        $region17: #{dqn_forward.1} parent=11 // pred_check
          %p209 = pneg %p81
        $region18: #{dqn_forward.1} parent=11 // pred_check_branch
          %211 = sbr.rel (%p209) target = $region20
        $region19: #{dqn_forward.1} parent=11 // pred_region
          _
        $region20: #{dqn_forward.1} parent=11 // pred_fallthru
          _
        // Predicated region
        $region21: #{dqn_forward.1} parent=11 // pred_check
          %p212 = pneg %p102
        $region22: #{dqn_forward.1} parent=11 // pred_check_branch
          %214 = sbr.rel (%p212) target = $region24
        $region23: #{dqn_forward.1} parent=11 // pred_region
          _
        $region24: #{dqn_forward.1} parent=11 // pred_fallthru
          _
        // Predicated region
        $region25: #{dqn_forward.1} parent=11 // pred_check
          %p215 = pneg %p123
        $region26: #{dqn_forward.1} parent=11 // pred_check_branch
          %217 = sbr.rel (%p215) target = $region28
        $region27: #{dqn_forward.1} parent=11 // pred_region
          _
        $region28: #{dqn_forward.1} parent=11 // pred_fallthru
          _
        // Predicated region
        $region29: #{dqn_forward.1} parent=11 // pred_check
          %p218 = pneg %p144
        $region30: #{dqn_forward.1} parent=11 // pred_check_branch
          %220 = sbr.rel (%p218) target = $region32
        $region31: #{dqn_forward.1} parent=11 // pred_region
          _
        $region32: #{dqn_forward.1} parent=11 // pred_fallthru
          _
        // Predicated region
        $region33: #{dqn_forward.1} parent=11 // pred_check
          %p221 = pneg %p165
        $region34: #{dqn_forward.1} parent=11 // pred_check_branch
          %223 = sbr.rel (%p221) target = $region36
        $region35: #{dqn_forward.1} parent=11 // pred_region
          _
        $region36: #{dqn_forward.1} parent=11 // pred_fallthru
          _
      $region12: #{dqn_forward.1} parent=5 // pred_fallthru
        _
      %p224 = scmp.lt.s32.totalorder %s13, 2
      // Predicated region
      $region37: #{dqn_forward.1} parent=5 // pred_check
        %p225 = pneg %p224
      $region38: #{dqn_forward.1} parent=5 // pred_check_branch
        %227 = sbr.rel (%p225) target = $region40
      $region39: #{dqn_forward.1} parent=5 // pred_region
        // Predicated region
        $region41: #{dqn_forward.1} parent=39 // pred_check
          %p228 = pneg %p33
        $region42: #{dqn_forward.1} parent=39 // pred_check_branch
          %230 = sbr.rel (%p228) target = $region44
        $region43: #{dqn_forward.1} parent=39 // pred_region
          %s231 = smul.u32 4, %s13
          %s232 = ssub.s32 7, %s231
          %p233 = scmp.lt.s32.totalorder %s232, 4
          %s234 = scalar_select %p233, %s232, 4
          %s235 = smul.u32 128, %s234
          %p236 = scmp.lt.s32.totalorder %s231, 6
          %s237 = scalar_select %p236, %s231, 6
          %s238 = smul.addr %s237, 8
          %s239 = scalar_lea.vmem %s0, %s238
          %s240 = smul.u32 4, %s13
          %s241 = ssub.s32 7, %s240
          %p242 = scmp.lt.s32.totalorder %s241, 4
          %s243 = scalar_select %p242, %s241, 4
          %s244 = smul.u32 128, %s243
        $region44: #{dqn_forward.1} parent=39 // pred_fallthru
          _
      $region40: #{dqn_forward.1} parent=5 // pred_fallthru
        _
      %p245 = scmp.le.s32.totalorder 1, %s13
      %p246 = scmp.lt.s32.totalorder %s13, 3
      %p247 = pnand %p245, %p246
      %p248 = pneg %p247
      // Predicated region
      $region45: #{dqn_forward.1} parent=5 // pred_check
        _
      $region46: #{dqn_forward.1} parent=5 // pred_check_branch
        %250 = sbr.rel (%p247) target = $region48
      $region47: #{dqn_forward.1} parent=5 // pred_region
        %s251 = ssub.s32 %s13, 1
        %s252 = smul.u32 4, %s18
        %s253 = ssub.s32 7, %s252
        %p254 = scmp.lt.s32.totalorder %s253, 4
        %s255 = scalar_select %p254, %s253, 4
        %s256 = smul.u32 128, %s255
        %p257 = scmp.lt.s32.totalorder %s252, 6
        %s258 = scalar_select %p257, %s252, 6
        %s259 = smul.addr %s258, 8
        %s260 = scalar_lea.vmem %s0, %s259
        %p261 = pneg %p39
        %p262 = pneg %p36
        %p263 = pneg %p60
        %p264 = pneg %p57
        %p265 = pneg %p81
        %p266 = pneg %p78
        %p267 = pneg %p102
        %p268 = pneg %p99
        %p269 = pneg %p123
        %p270 = pneg %p120
        %p271 = pneg %p144
        %p272 = pneg %p141
        %p273 = pneg %p165
        %p274 = pneg %p162
        %p275 = pneg %p191
        %p276 = pneg %p188
        %s277 = sand.u32 %s178, 1
        %s278 = sand.u32 %s178, 1
        %s279 = smul.addr %s278, 32
        %s280 = scalar_lea.vmem [#allocation2], %s279
        %s281 = smul.u32 4, %s18
        %s282 = ssub.s32 7, %s281
        %p283 = scmp.lt.s32.totalorder %s282, 4
        %s284 = scalar_select %p283, %s282, 4
        %s285 = smul.u32 128, %s284
        %p286 = scmp.lt.s32.totalorder %s281, 6
        %s287 = scalar_select %p286, %s281, 6
        %s288 = smul.addr %s287, 8
        %s289 = scalar_lea.vmem %s0, %s288
        %s290 = smul.u32 4, %s18
        %s291 = ssub.s32 7, %s290
        %p292 = scmp.lt.s32.totalorder %s291, 4
        %s293 = scalar_select %p292, %s291, 4
        %s294 = smul.u32 128, %s293
        %s295 = smul.u32 4, %s18
        %s296 = ssub.s32 7, %s295
        %p297 = scmp.lt.s32.totalorder %s296, 4
        %s298 = scalar_select %p297, %s296, 4
        %s299 = smul.u32 128, %s298
        %v301 = vld [vmem:[%s289] sm:$0xff]
        %v302 = vld [vmem:[%s289 + $0x8] sm:$0xff]
        %v303 = vld [vmem:[%s289 + $0x10] sm:$0xff]
        %v304 = vld [vmem:[%s289 + $0x18] sm:$0xff]
        %v305 = vpack.c.bf16 %v302, %v301
        %v306 = vpack.c.bf16 %v304, %v303
        %v307 = vld [vmem:[%s1] sm:$0xf]
        %v308 = vld [vmem:[%s1 + $0x4] sm:$0xf]
        %v309 = vld [vmem:[%s1 + $0x8] sm:$0xf]
        %v310 = vld [vmem:[%s1 + $0xc] sm:$0xf]
        %v311 = vld [vmem:[%s2] sm:$0x1]
        %v313 = vlaneseq
        %v314 = vshrl.u32 %v313, 7
        %v315 = vsub.s32 0, %v314
        %v316 = vrot.slane %v311, %v315
        %v322 = vunpack.c.l.b16 %v307
        %v323 = vunpack.c.l.b16 %v308
        %v324 = vunpack.c.l.b16 %v309
        %v325 = vunpack.c.l.b16 %v310
        %v326 = vpack.c.b16 %v323, %v322
        %v327 = vpack.c.b16 %v325, %v324
        %vm330 = vcmask 261120
        %v332 = vsel %vm330, %v305, 0
        %v335 = vsel %vm330, %v306, 0
        %337 = vmatprep.subr.bf16.mxu0 0
        %338 = vmatpush1.bf16.msra.mxu0 %v326
        %339 = vmatprep.subr.bf16.mxu0 0
        %340 = vmatpush1.bf16.msra.mxu0 %v327
        %341 = vmatprep.subr.bf16.mxu0 0
        %342 = vmatpush1.bf16.msra.mxu0 0
        %343 = vmatprep.subr.bf16.mxu0 0
        %344 = vmatpush1.bf16.msra.mxu0 0
        %345 = vmatprep.subr.bf16.mxu0 0
        %346 = vmatpush1.bf16.msra.mxu0 0
        %347 = vmatprep.subr.bf16.mxu0 0
        %348 = vmatpush1.bf16.msra.mxu0 0
        %349 = vmatprep.subr.bf16.mxu0 0
        %350 = vmatpush1.bf16.msra.mxu0 0
        %351 = vmatprep.subr.bf16.mxu0 0
        %352 = vmatpush1.bf16.msra.mxu0 0
        %353 = vmatprep.subr.bf16.mxu0 0
        %354 = vmatpush1.bf16.msra.mxu0 0
        %355 = vmatprep.subr.bf16.mxu0 0
        %356 = vmatpush1.bf16.msra.mxu0 0
        %357 = vmatprep.subr.bf16.mxu0 0
        %358 = vmatpush1.bf16.msra.mxu0 0
        %359 = vmatprep.subr.bf16.mxu0 0
        %360 = vmatpush1.bf16.msra.mxu0 0
        %361 = vmatprep.subr.bf16.mxu0 0
        %362 = vmatpush1.bf16.msra.mxu0 0
        %363 = vmatprep.subr.bf16.mxu0 0
        %364 = vmatpush1.bf16.msra.mxu0 0
        %365 = vmatprep.subr.bf16.mxu0 0
        %366 = vmatpush1.bf16.msra.mxu0 0
        %367 = vmatprep.subr.bf16.mxu0 0
        %368 = vmatpush1.bf16.msra.mxu0 0
        %369 = vmatprep.mubr.bf16.mxu0 0
        %370 = vmatmul.mubr.bf16.gmra.mrb[0].mxu0 %v332
        %v371 = vpop.f32.mrb[0].mxu0
        %v372 = vadd.f32 %v316, %v371
        %v373 = vpop.f32.mrb[0].mxu0
        %v374 = vpop.f32.mrb[0].mxu0
        %v375 = vadd.f32 %v316, %v374
        %v376 = vpop.f32.mrb[0].mxu0
        %377 = vmatprep.mubr.bf16.mxu0 0
        %378 = vmatmul.mubr.bf16.gmra.mrb[0].mxu0 %v335
        %v379 = vpop.f32.mrb[0].mxu0
        %v380 = vadd.f32 %v316, %v379
        %v381 = vpop.f32.mrb[0].mxu0
        %v382 = vpop.f32.mrb[0].mxu0
        %v383 = vadd.f32 %v316, %v382
        %v384 = vpop.f32.mrb[0].mxu0
        %385 = vdwg.mxu0
        %v386 = vmax.f32 %v372, 0.0
        %v387 = vmax.f32 %v375, 0.0
        %v388 = vmax.f32 %v380, 0.0
        %v389 = vmax.f32 %v383, 0.0
        %v390 = vpack.c.bf16 %v387, %v386
        %v391 = vpack.c.bf16 %v389, %v388
        %v392 = vld [vmem:[%s3] sm:$0xf]
        %v393 = vld [vmem:[%s3 + $0x4] sm:$0xf]
        %v394 = vld [vmem:[%s3 + $0x8] sm:$0xf]
        %v395 = vld [vmem:[%s3 + $0xc] sm:$0xf]
        %v396 = vld [vmem:[%s3 + $0x10] sm:$0xf]
        %v397 = vld [vmem:[%s3 + $0x14] sm:$0xf]
        %v398 = vld [vmem:[%s3 + $0x18] sm:$0xf]
        %v399 = vld [vmem:[%s3 + $0x1c] sm:$0xf]
        %v400 = vld [vmem:[%s3 + $0x20] sm:$0xf]
        %v401 = vld [vmem:[%s3 + $0x24] sm:$0xf]
        %v402 = vld [vmem:[%s3 + $0x28] sm:$0xf]
        %v403 = vld [vmem:[%s3 + $0x2c] sm:$0xf]
        %v404 = vld [vmem:[%s3 + $0x30] sm:$0xf]
        %v405 = vld [vmem:[%s3 + $0x34] sm:$0xf]
        %v406 = vld [vmem:[%s3 + $0x38] sm:$0xf]
        %v407 = vld [vmem:[%s3 + $0x3c] sm:$0xf]
        %v408 = vld [vmem:[%s4] sm:$0x1]
        %v410 = vlaneseq
        %v411 = vshrl.u32 %v410, 7
        %v412 = vsub.s32 0, %v411
        %v413 = vrot.slane %v408, %v412
        %v431 = vunpack.c.l.b16 %v392
        %v432 = vunpack.c.l.b16 %v393
        %v433 = vunpack.c.l.b16 %v394
        %v434 = vunpack.c.l.b16 %v395
        %v435 = vunpack.c.l.b16 %v396
        %v436 = vunpack.c.l.b16 %v397
        %v437 = vunpack.c.l.b16 %v398
        %v438 = vunpack.c.l.b16 %v399
        %v439 = vunpack.c.l.b16 %v400
        %v440 = vunpack.c.l.b16 %v401
        %v441 = vunpack.c.l.b16 %v402
        %v442 = vunpack.c.l.b16 %v403
        %v443 = vunpack.c.l.b16 %v404
        %v444 = vunpack.c.l.b16 %v405
        %v445 = vunpack.c.l.b16 %v406
        %v446 = vunpack.c.l.b16 %v407
        %v447 = vpack.c.b16 %v432, %v431
        %v448 = vpack.c.b16 %v434, %v433
        %v449 = vpack.c.b16 %v436, %v435
        %v450 = vpack.c.b16 %v438, %v437
        %v451 = vpack.c.b16 %v440, %v439
        %v452 = vpack.c.b16 %v442, %v441
        %v453 = vpack.c.b16 %v444, %v443
        %v454 = vpack.c.b16 %v446, %v445
        %463 = vmatprep.subr.bf16.mxu0 0
        %464 = vmatpush1.bf16.msra.mxu0 %v447
        %465 = vmatprep.subr.bf16.mxu0 0
        %466 = vmatpush1.bf16.msra.mxu0 %v448
        %467 = vmatprep.subr.bf16.mxu0 0
        %468 = vmatpush1.bf16.msra.mxu0 %v449
        %469 = vmatprep.subr.bf16.mxu0 0
        %470 = vmatpush1.bf16.msra.mxu0 %v450
        %471 = vmatprep.subr.bf16.mxu0 0
        %472 = vmatpush1.bf16.msra.mxu0 %v451
        %473 = vmatprep.subr.bf16.mxu0 0
        %474 = vmatpush1.bf16.msra.mxu0 %v452
        %475 = vmatprep.subr.bf16.mxu0 0
        %476 = vmatpush1.bf16.msra.mxu0 %v453
        %477 = vmatprep.subr.bf16.mxu0 0
        %478 = vmatpush1.bf16.msra.mxu0 %v454
        %479 = vmatprep.subr.bf16.mxu0 0
        %480 = vmatpush1.bf16.msra.mxu0 0
        %481 = vmatprep.subr.bf16.mxu0 0
        %482 = vmatpush1.bf16.msra.mxu0 0
        %483 = vmatprep.subr.bf16.mxu0 0
        %484 = vmatpush1.bf16.msra.mxu0 0
        %485 = vmatprep.subr.bf16.mxu0 0
        %486 = vmatpush1.bf16.msra.mxu0 0
        %487 = vmatprep.subr.bf16.mxu0 0
        %488 = vmatpush1.bf16.msra.mxu0 0
        %489 = vmatprep.subr.bf16.mxu0 0
        %490 = vmatpush1.bf16.msra.mxu0 0
        %491 = vmatprep.subr.bf16.mxu0 0
        %492 = vmatpush1.bf16.msra.mxu0 0
        %493 = vmatprep.subr.bf16.mxu0 0
        %494 = vmatpush1.bf16.msra.mxu0 0
        %495 = vmatprep.mubr.bf16.mxu0 0
        %496 = vmatmul.mubr.bf16.gmra.mrb[0].mxu0 %v390
        %v497 = vpop.f32.mrb[0].mxu0
        %v498 = vadd.f32 %v413, %v497
        %v499 = vpop.f32.mrb[0].mxu0
        %v500 = vpop.f32.mrb[0].mxu0
        %v501 = vadd.f32 %v413, %v500
        %v502 = vpop.f32.mrb[0].mxu0
        %503 = vmatprep.mubr.bf16.mxu0 0
        %504 = vmatmul.mubr.bf16.gmra.mrb[0].mxu0 %v391
        %v505 = vpop.f32.mrb[0].mxu0
        %v506 = vadd.f32 %v413, %v505
        %v507 = vpop.f32.mrb[0].mxu0
        %v508 = vpop.f32.mrb[0].mxu0
        %v509 = vadd.f32 %v413, %v508
        %v510 = vpop.f32.mrb[0].mxu0
        %511 = vdwg.mxu0
        %v512 = vmax.f32 %v498, 0.0
        %v513 = vmax.f32 %v501, 0.0
        %v514 = vmax.f32 %v506, 0.0
        %v515 = vmax.f32 %v509, 0.0
        %v516 = vpack.c.bf16 %v513, %v512
        %v517 = vpack.c.bf16 %v515, %v514
        %v518 = vld [vmem:[%s5] sm:$0xf]
        %v519 = vld [vmem:[%s5 + $0x4] sm:$0xf]
        %v520 = vld [vmem:[%s5 + $0x8] sm:$0xf]
        %v521 = vld [vmem:[%s5 + $0xc] sm:$0xf]
        %v522 = vld [vmem:[%s5 + $0x10] sm:$0xf]
        %v523 = vld [vmem:[%s5 + $0x14] sm:$0xf]
        %v524 = vld [vmem:[%s5 + $0x18] sm:$0xf]
        %v525 = vld [vmem:[%s5 + $0x1c] sm:$0xf]
        %v526 = vld [vmem:[%s5 + $0x20] sm:$0xf]
        %v527 = vld [vmem:[%s5 + $0x24] sm:$0xf]
        %v528 = vld [vmem:[%s5 + $0x28] sm:$0xf]
        %v529 = vld [vmem:[%s5 + $0x2c] sm:$0xf]
        %v530 = vld [vmem:[%s5 + $0x30] sm:$0xf]
        %v531 = vld [vmem:[%s5 + $0x34] sm:$0xf]
        %v532 = vld [vmem:[%s5 + $0x38] sm:$0xf]
        %v533 = vld [vmem:[%s5 + $0x3c] sm:$0xf]
        %v534 = vld [vmem:[%s6] sm:$0x1]
        %v536 = vlaneseq
        %v537 = vshrl.u32 %v536, 7
        %v538 = vsub.s32 0, %v537
        %v539 = vrot.slane %v534, %v538
        %v557 = vunpack.c.l.b16 %v518
        %v558 = vunpack.c.l.b16 %v519
        %v559 = vunpack.c.l.b16 %v520
        %v560 = vunpack.c.l.b16 %v521
        %v561 = vunpack.c.l.b16 %v522
        %v562 = vunpack.c.l.b16 %v523
        %v563 = vunpack.c.l.b16 %v524
        %v564 = vunpack.c.l.b16 %v525
        %v565 = vunpack.c.l.b16 %v526
        %v566 = vunpack.c.l.b16 %v527
        %v567 = vunpack.c.l.b16 %v528
        %v568 = vunpack.c.l.b16 %v529
        %v569 = vunpack.c.l.b16 %v530
        %v570 = vunpack.c.l.b16 %v531
        %v571 = vunpack.c.l.b16 %v532
        %v572 = vunpack.c.l.b16 %v533
        %v573 = vpack.c.b16 %v558, %v557
        %v574 = vpack.c.b16 %v560, %v559
        %v575 = vpack.c.b16 %v562, %v561
        %v576 = vpack.c.b16 %v564, %v563
        %v577 = vpack.c.b16 %v566, %v565
        %v578 = vpack.c.b16 %v568, %v567
        %v579 = vpack.c.b16 %v570, %v569
        %v580 = vpack.c.b16 %v572, %v571
        %589 = vmatprep.subr.bf16.mxu0 0
        %590 = vmatpush1.bf16.msra.mxu0 %v573
        %591 = vmatprep.subr.bf16.mxu0 0
        %592 = vmatpush1.bf16.msra.mxu0 %v574
        %593 = vmatprep.subr.bf16.mxu0 0
        %594 = vmatpush1.bf16.msra.mxu0 %v575
        %595 = vmatprep.subr.bf16.mxu0 0
        %596 = vmatpush1.bf16.msra.mxu0 %v576
        %597 = vmatprep.subr.bf16.mxu0 0
        %598 = vmatpush1.bf16.msra.mxu0 %v577
        %599 = vmatprep.subr.bf16.mxu0 0
        %600 = vmatpush1.bf16.msra.mxu0 %v578
        %601 = vmatprep.subr.bf16.mxu0 0
        %602 = vmatpush1.bf16.msra.mxu0 %v579
        %603 = vmatprep.subr.bf16.mxu0 0
        %604 = vmatpush1.bf16.msra.mxu0 %v580
        %605 = vmatprep.subr.bf16.mxu0 0
        %606 = vmatpush1.bf16.msra.mxu0 0
        %607 = vmatprep.subr.bf16.mxu0 0
        %608 = vmatpush1.bf16.msra.mxu0 0
        %609 = vmatprep.subr.bf16.mxu0 0
        %610 = vmatpush1.bf16.msra.mxu0 0
        %611 = vmatprep.subr.bf16.mxu0 0
        %612 = vmatpush1.bf16.msra.mxu0 0
        %613 = vmatprep.subr.bf16.mxu0 0
        %614 = vmatpush1.bf16.msra.mxu0 0
        %615 = vmatprep.subr.bf16.mxu0 0
        %616 = vmatpush1.bf16.msra.mxu0 0
        %617 = vmatprep.subr.bf16.mxu0 0
        %618 = vmatpush1.bf16.msra.mxu0 0
        %619 = vmatprep.subr.bf16.mxu0 0
        %620 = vmatpush1.bf16.msra.mxu0 0
        %621 = vmatprep.mubr.bf16.mxu0 0
        %622 = vmatmul.mubr.bf16.gmra.mrb[0].mxu0 %v516
        %v623 = vpop.f32.mrb[0].mxu0
        %v624 = vadd.f32 %v539, %v623
        %v625 = vpop.f32.mrb[0].mxu0
        %v626 = vpop.f32.mrb[0].mxu0
        %v627 = vadd.f32 %v539, %v626
        %v628 = vpop.f32.mrb[0].mxu0
        %629 = vmatprep.mubr.bf16.mxu0 0
        %630 = vmatmul.mubr.bf16.gmra.mrb[0].mxu0 %v517
        %v631 = vpop.f32.mrb[0].mxu0
        %v632 = vadd.f32 %v539, %v631
        %v633 = vpop.f32.mrb[0].mxu0
        %v634 = vpop.f32.mrb[0].mxu0
        %v635 = vadd.f32 %v539, %v634
        %v636 = vpop.f32.mrb[0].mxu0
        %637 = vdwg.mxu0
        %vm638 = vcmask 64512
        %639 = vst.msk [vmem:[%s280] sm:$0xff] %vm638, %v624
        %640 = vst.msk [vmem:[%s280 + $0x8] sm:$0xff] %vm638, %v627
        %641 = vst.msk [vmem:[%s280 + $0x10] sm:$0xff] %vm638, %v632
        %642 = vst.msk [vmem:[%s280 + $0x18] sm:$0xff] %vm638, %v635
        %s643 = sand.u32 %s178, 1
        %s644 = sand.u32 %s178, 1
        %s645 = smul.addr %s644, 32
        %s646 = scalar_lea.vmem [#allocation2], %s645
        // Predicated region
        $region49: #{dqn_forward.1} parent=47 // pred_check
          %p647 = pneg %p188
        $region50: #{dqn_forward.1} parent=47 // pred_check_branch
          %649 = sbr.rel (%p647) target = $region52
        $region51: #{dqn_forward.1} parent=47 // pred_region
          %s650 = smul.u32 4, %s18
          %s651 = ssub.s32 7, %s650
          %p652 = scmp.lt.s32.totalorder %s651, 4
          %s653 = scalar_select %p652, %s651, 4
          %s654 = smul.u32 128, %s653
          %p655 = scmp.ne.s32.totalorder 0, %s654
          %s656 = smul.addr %s650, 8
          %s657 = scalar_lea.vmem %s7, %s656
          // Predicated region
          $region53: #{dqn_forward.1} parent=51 // pred_check
            %p658 = pneg %p655
          $region54: #{dqn_forward.1} parent=51 // pred_check_branch
            %660 = sbr.rel (%p658) target = $region56
          $region55: #{dqn_forward.1} parent=51 // pred_region
            // Predicated region
            $region57: #{dqn_forward.1} parent=55 // pred_check
              _
            $region58: #{dqn_forward.1} parent=55 // pred_check_branch
              %662 = sbr.rel (0) target = $region60
            $region59: #{dqn_forward.1} parent=55 // pred_region
              // Predicated region
              $region79: #{dqn_forward.1} parent=59 // pred_check
                _
              $region80: #{dqn_forward.1} parent=59 // pred_check_branch
                %717 = sbr.rel (0) target = $region82
              $region81: #{dqn_forward.1} parent=59 // pred_region
                %s718 = sshrl.u32 %s653, 2
                // While loop
                $region83: #{dqn_forward.1} parent=81 // loop_pre_header
                  _
                $region84: #{dqn_forward.1} parent=81 // loop_header
                  %s720 = sphi 0, %s722
                  %p721 = scmp.ge.s32.totalorder %s720, %s718
                  %s725 = sphi 0, %s738
                  %s726 = sphi %s646, %s741
                  %s727 = sphi %s657, %s742
                $region85: #{dqn_forward.1} parent=81 // loop_header_branch
                  %724 = sbr.rel (%p721) target = $region89
                $region86: #{dqn_forward.1} parent=81 // loop_body
                  %v728 = vld [vmem:[%s726] sm:$0xff]
                  %729 = vst [vmem:[%s727] sm:$0xff] %v728
                  %v730 = vld [vmem:[%s726 + $0x8] sm:$0xff]
                  %731 = vst [vmem:[%s727 + $0x8] sm:$0xff] %v730
                  %v732 = vld [vmem:[%s726 + $0x10] sm:$0xff]
                  %733 = vst [vmem:[%s727 + $0x10] sm:$0xff] %v732
                  %v734 = vld [vmem:[%s726 + $0x18] sm:$0xff]
                  %735 = vst [vmem:[%s727 + $0x18] sm:$0xff] %v734
                  %s736 = sadd.s32 1, %s725
                  %p737 = scmp.ge.s32.totalorder %s736, %s718
                  %s738 = scalar_select %p737, 0, %s736
                  %s739 = smul.u32 %s738, 32
                  %s740 = smul.u32 %s738, 32
                  %s741 = scalar_lea.vmem %s646, %s739 [#allocation2]
                  %s742 = scalar_lea.vmem %s657, %s740
                $region87: #{dqn_forward.1} parent=81 // loop_footer
                  %s722 = sadd.s32 %s720, 1
                $region88: #{dqn_forward.1} parent=81 // loop_footer_branch
                  %719 = sbr.rel target = $region84
                $region89: #{dqn_forward.1} parent=81 // loop_exit
                  _
                %s743 = sshrl.u32 %s653, 2
                %s744 = sand.u32 %s653, 3
                %s745 = smul.u32 %s743, 4
                %s746 = smul.u32 8, %s745
                %s747 = scalar_lea.vmem %s646, %s746 [#allocation2]
                %s748 = smul.u32 8, %s745
                %s749 = scalar_lea.vmem %s657, %s748
                // While loop
                $region90: #{dqn_forward.1} parent=81 // loop_pre_header
                  _
                $region91: #{dqn_forward.1} parent=81 // loop_header
                  %s751 = sphi 0, %s753
                  %p752 = scmp.ge.s32.totalorder %s751, %s744
                  %s756 = sphi 0, %s763
                  %s757 = sphi %s747, %s766
                  %s758 = sphi %s749, %s767
                $region92: #{dqn_forward.1} parent=81 // loop_header_branch
                  %755 = sbr.rel (%p752) target = $region96
                $region93: #{dqn_forward.1} parent=81 // loop_body
                  %v759 = vld [vmem:[%s757] sm:$0xff]
                  %760 = vst [vmem:[%s758] sm:$0xff] %v759
                  %s761 = sadd.s32 1, %s756
                  %p762 = scmp.ge.s32.totalorder %s761, %s744
                  %s763 = scalar_select %p762, 0, %s761
                  %s764 = smul.u32 %s763, 8
                  %s765 = smul.u32 %s763, 8
                  %s766 = scalar_lea.vmem %s747, %s764 [#allocation2]
                  %s767 = scalar_lea.vmem %s749, %s765
                $region94: #{dqn_forward.1} parent=81 // loop_footer
                  %s753 = sadd.s32 %s751, 1
                $region95: #{dqn_forward.1} parent=81 // loop_footer_branch
                  %750 = sbr.rel target = $region91
                $region96: #{dqn_forward.1} parent=81 // loop_exit
                  _
              $region82: #{dqn_forward.1} parent=59 // pred_fallthru
                _
              // Predicated region
              $region97: #{dqn_forward.1} parent=59 // pred_check
                _
              $region98: #{dqn_forward.1} parent=59 // pred_check_branch
                %769 = sbr.rel target = $region100
              $region99: #{dqn_forward.1} parent=59 // pred_region
                _
              $region100: #{dqn_forward.1} parent=59 // pred_fallthru
                _
            $region60: #{dqn_forward.1} parent=55 // pred_fallthru
              _
            // Predicated region
            $region61: #{dqn_forward.1} parent=55 // pred_check
              _
            $region62: #{dqn_forward.1} parent=55 // pred_check_branch
              %664 = sbr.rel target = $region64
            $region63: #{dqn_forward.1} parent=55 // pred_region
              %s666 = sshrl.u32 %s653, 2
              // While loop
              $region65: #{dqn_forward.1} parent=63 // loop_pre_header
                _
              $region66: #{dqn_forward.1} parent=63 // loop_header
                %s668 = sphi 0, %s670
                %p669 = scmp.ge.s32.totalorder %s668, %s666
                %s673 = sphi 0, %s686
                %s674 = sphi %s646, %s689
                %s675 = sphi %s657, %s690
              $region67: #{dqn_forward.1} parent=63 // loop_header_branch
                %672 = sbr.rel (%p669) target = $region71
              $region68: #{dqn_forward.1} parent=63 // loop_body
                %v676 = vld [vmem:[%s674] sm:$0xff]
                %677 = vst [vmem:[%s675] sm:$0xff] %v676
                %v678 = vld [vmem:[%s674 + $0x8] sm:$0xff]
                %679 = vst [vmem:[%s675 + $0x8] sm:$0xff] %v678
                %v680 = vld [vmem:[%s674 + $0x10] sm:$0xff]
                %681 = vst [vmem:[%s675 + $0x10] sm:$0xff] %v680
                %v682 = vld [vmem:[%s674 + $0x18] sm:$0xff]
                %683 = vst [vmem:[%s675 + $0x18] sm:$0xff] %v682
                %s684 = sadd.s32 1, %s673
                %p685 = scmp.ge.s32.totalorder %s684, %s666
                %s686 = scalar_select %p685, 0, %s684
                %s687 = smul.u32 %s686, 32
                %s688 = smul.u32 %s686, 32
                %s689 = scalar_lea.vmem %s646, %s687 [#allocation2]
                %s690 = scalar_lea.vmem %s657, %s688
              $region69: #{dqn_forward.1} parent=63 // loop_footer
                %s670 = sadd.s32 %s668, 1
              $region70: #{dqn_forward.1} parent=63 // loop_footer_branch
                %667 = sbr.rel target = $region66
              $region71: #{dqn_forward.1} parent=63 // loop_exit
                _
              %s691 = sshrl.u32 %s653, 2
              %s692 = sand.u32 %s653, 3
              %s693 = smul.u32 %s691, 4
              %s694 = smul.u32 8, %s693
              %s695 = scalar_lea.vmem %s646, %s694 [#allocation2]
              %s696 = smul.u32 8, %s693
              %s697 = scalar_lea.vmem %s657, %s696
              // While loop
              $region72: #{dqn_forward.1} parent=63 // loop_pre_header
                _
              $region73: #{dqn_forward.1} parent=63 // loop_header
                %s699 = sphi 0, %s701
                %p700 = scmp.ge.s32.totalorder %s699, %s692
                %s704 = sphi 0, %s711
                %s705 = sphi %s695, %s714
                %s706 = sphi %s697, %s715
              $region74: #{dqn_forward.1} parent=63 // loop_header_branch
                %703 = sbr.rel (%p700) target = $region78
              $region75: #{dqn_forward.1} parent=63 // loop_body
                %v707 = vld [vmem:[%s705] sm:$0xff]
                %708 = vst [vmem:[%s706] sm:$0xff] %v707
                %s709 = sadd.s32 1, %s704
                %p710 = scmp.ge.s32.totalorder %s709, %s692
                %s711 = scalar_select %p710, 0, %s709
                %s712 = smul.u32 %s711, 8
                %s713 = smul.u32 %s711, 8
                %s714 = scalar_lea.vmem %s695, %s712 [#allocation2]
                %s715 = scalar_lea.vmem %s697, %s713
              $region76: #{dqn_forward.1} parent=63 // loop_footer
                %s701 = sadd.s32 %s699, 1
              $region77: #{dqn_forward.1} parent=63 // loop_footer_branch
                %698 = sbr.rel target = $region73
              $region78: #{dqn_forward.1} parent=63 // loop_exit
                _
            $region64: #{dqn_forward.1} parent=55 // pred_fallthru
              _
          $region56: #{dqn_forward.1} parent=51 // pred_fallthru
            _
          %770 = vnop
        $region52: #{dqn_forward.1} parent=47 // pred_fallthru
          _
      $region48: #{dqn_forward.1} parent=5 // pred_fallthru
        _
      %p771 = scmp.le.s32.totalorder 2, %s13
      // Predicated region
      $region101: #{dqn_forward.1} parent=5 // pred_check
        %p772 = pneg %p771
      $region102: #{dqn_forward.1} parent=5 // pred_check_branch
        %774 = sbr.rel (%p772) target = $region104
      $region103: #{dqn_forward.1} parent=5 // pred_region
        %s775 = ssub.s32 %s13, 2
        // Predicated region
        $region105: #{dqn_forward.1} parent=103 // pred_check
          %p776 = pneg %p194
        $region106: #{dqn_forward.1} parent=103 // pred_check_branch
          %778 = sbr.rel (%p776) target = $region108
        $region107: #{dqn_forward.1} parent=103 // pred_region
          %s779 = sand.u32 %s179, 1
          %s780 = sand.u32 %s179, 1
          %s781 = smul.addr %s780, 32
          %s782 = scalar_lea.vmem [#allocation2], %s781
        $region108: #{dqn_forward.1} parent=103 // pred_fallthru
          _
      $region104: #{dqn_forward.1} parent=5 // pred_fallthru
        _
    $region6: #{dqn_forward.1} parent=1 // loop_footer
      %s17 = sadd.s32 1, %s13
    $region7: #{dqn_forward.1} parent=1 // loop_footer_branch
      %12 = sbr.rel target = $region3
    $region8: #{dqn_forward.1} parent=1 // loop_exit
      _

</llo_original>
